<compile_context>
chip_gen: v5e
topology: v5e:2x2
jax: 0.10.0
libtpu: 0.0.40
codegen_flags: <defaults>
</compile_context>

<pallas_src>
import functools

import jax
import jax.numpy as jnp
from jax.experimental import pallas as pl
from jax.experimental.pallas import tpu as pltpu


# ----------------------------------------------------------------------------
# Per-generation VMEM budget.
# ----------------------------------------------------------------------------
def _vmem_capacity_bytes():
    try:
        return int(pltpu.get_tpu_info().vmem_capacity_bytes)
    except Exception:   # unknown chip / API change -> assume smallest (v7x: 64 MiB)
        return 64 * 1024 * 1024


_VMEM_CAP = _vmem_capacity_bytes()
# v5e/v6e (128 MiB VMEM): large scoped limit; v7x (64 MiB): keep ~32 MiB scoped.
_VMEM_LIMIT_BYTES = (96 * 1024 * 1024 if _VMEM_CAP >= 100 * 1024 * 1024
                     else 32 * 1024 * 1024)
_VMEM_BUDGET = int(_VMEM_LIMIT_BYTES * 3 / 4)       # headroom for compiler scratch

# Flipped off (once) if Mosaic cannot lower the in-kernel row gather.
_IN_KERNEL_GATHER_OK = True


def _pick_lt(lc, per_row_bytes, fixed_bytes, max_lt=1024):
    """Largest Lc-divisor tile (multiple of 8, or Lc itself) fitting the VMEM budget."""
    budget = max(_VMEM_BUDGET - fixed_bytes, 0)
    cands = sorted({t for t in range(8, min(lc, max_lt) + 1, 8) if lc % t == 0},
                   reverse=True)
    if lc <= max_lt or not cands:
        cands = [lc] + cands
    for lt in cands:
        if lt * per_row_bytes <= budget:
            return lt
    return cands[-1]


def _fine_row_bytes(d, k4, emit_attn, pregathered):
    """Rough per-query-row VMEM footprint of one fine block (double-buffered)."""
    bf16, f32, i32 = 2, 4, 4
    q = 4 * d * bf16 * 2
    out_m = 4 * d * f32 * 2
    out_a = (4 * k4 * bf16 * 2) if emit_attn else 0
    kv_in = (2 * k4 * d * bf16 * 2) if pregathered else 0
    idx_in = 0 if pregathered else k4 * i32 * 2
    tmp = 2 * k4 * d * bf16 + 3 * 4 * k4 * f32 + 4 * d * f32    # in-kernel live values
    return q + out_m + out_a + kv_in + idx_in + tmp


# ----------------------------------------------------------------------------
# Coarse level: dense attention over the whole (tiny) coarsest level, one block.
# ----------------------------------------------------------------------------
def _coarse_attn_kernel(q_ref, k_ref, v_ref, a_ref, m_ref, *, temp):
    q = q_ref[...]                                    # [G, L, d]  bf16
    k = k_ref[...]                                    # [G, S, d]  bf16
    v = v_ref[...]                                    # [G, S, d]  bf16
    s = jnp.einsum("gld,gsd->gls", q, k,
                   preferred_element_type=jnp.float32) * temp     # MXU, f32 accum
    s = s - jnp.max(s, axis=-1, keepdims=True)
    p = jnp.exp(s)                                    # f32 softmax math
    a = p / jnp.sum(p, axis=-1, keepdims=True)        # exact normalization
    a_ref[...] = a.astype(a_ref.dtype)                # bf16 A (only feeds top_k)
    m_ref[...] = jnp.einsum("gls,gsd->gld", a.astype(v.dtype), v,
                            preferred_element_type=jnp.float32)


def coarse_attention(q, k, v, temp):
    # q/k/v: [BH, L, d] bf16 -> A: [BH, L, S] bf16, message: [BH, L, d] f32
    BH, L, d = q.shape
    S = k.shape[1]
    kern = functools.partial(_coarse_attn_kernel, temp=temp)
    return pl.pallas_call(
        kern,
        out_shape=(jax.ShapeDtypeStruct((BH, L, S), jnp.bfloat16),
                   jax.ShapeDtypeStruct((BH, L, d), jnp.float32)),
        grid=(1,),
        in_specs=[pl.BlockSpec((BH, L, d), lambda i: (0, 0, 0)),
                  pl.BlockSpec((BH, S, d), lambda i: (0, 0, 0)),
                  pl.BlockSpec((BH, S, d), lambda i: (0, 0, 0))],
        out_specs=(pl.BlockSpec((BH, L, S), lambda i: (0, 0, 0)),
                   pl.BlockSpec((BH, L, d), lambda i: (0, 0, 0))),
        compiler_params=pltpu.CompilerParams(
            dimension_semantics=("arbitrary",),
            vmem_limit_bytes=_VMEM_LIMIT_BYTES),
    )(q, k, v)


# ----------------------------------------------------------------------------
# Fine levels: sparse quadtree attention -- each query cell attends to the K4
# children of its parent's top-k keys.  bf16 MXU contractions, f32 softmax.
# ----------------------------------------------------------------------------
def _fine_block_math(q, kg, vg, out_refs, temp):
    # q: [Lt, 4, d] bf16; kg/vg: [Lt, K4, d] bf16 (per-row batched contractions)
    lt, _, d = q.shape
    k4 = kg.shape[1]
    s = jnp.einsum("ltd,lkd->ltk", q, kg,
                   preferred_element_type=jnp.float32) * temp     # [Lt, 4, K4] f32
    s = s - jnp.max(s, axis=-1, keepdims=True)
    p = jnp.exp(s)
    a = p / jnp.sum(p, axis=-1, keepdims=True)                    # exact division
    m = jnp.einsum("ltk,lkd->ltd", a.astype(vg.dtype), vg,
                   preferred_element_type=jnp.float32)            # [Lt, 4, d] f32
    if len(out_refs) == 2:
        a_ref, m_ref = out_refs
        # single lane-dense [Lt, 4*K4] store (t-major packing)
        a_ref[0] = a.reshape(lt, 4 * k4).astype(a_ref.dtype)
    else:
        (m_ref,) = out_refs
    m_ref[0] = m.reshape(lt, 4 * d)                               # [Lt, 4*d], t-major


def _fine_gather_kernel(idx_ref, q_ref, k_ref, v_ref, *out_refs, temp):
    # k_ref/v_ref hold the full per-(batch,head) key/value slab [S, d], kept
    # resident in VMEM across the Lc-tile grid axis; gather the K4 rows per
    # query cell in-kernel so kg/vg never round-trip through HBM.
    idx = idx_ref[0]                                               # [Lt, K4] int32
    kg = jnp.take(k_ref[0], idx, axis=0, mode="clip")              # [Lt, K4, d]
    vg = jnp.take(v_ref[0], idx, axis=0, mode="clip")
    _fine_block_math(q_ref[0], kg, vg, out_refs, temp)


def _fine_pregathered_kernel(q_ref, kg_ref, vg_ref, *out_refs, temp):
    _fine_block_math(q_ref[0], kg_ref[0], vg_ref[0], out_refs, temp)


def _fine_out(BH, Lc, K4, d, Lt, emit_attn):
    m_shape = jax.ShapeDtypeStruct((BH, Lc, 4 * d), jnp.float32)
    m_spec = pl.BlockSpec((1, Lt, 4 * d), lambda i, j: (i, j, 0))
    if emit_attn:
        return ((jax.ShapeDtypeStruct((BH, Lc, 4 * K4), jnp.bfloat16), m_shape),
                (pl.BlockSpec((1, Lt, 4 * K4), lambda i, j: (i, j, 0)), m_spec))
    return ((m_shape,), (m_spec,))


def _fine_attention_gather(qh, kh, vh, idx, temp, *, emit_attn):
    BH, Lc, _, d = qh.shape
    S = kh.shape[1]
    K4 = idx.shape[2]
    fixed = 2 * 2 * S * d * 2                       # double-buffered resident k/v slabs
    Lt = _pick_lt(Lc, _fine_row_bytes(d, K4, emit_attn, pregathered=False), fixed)
    out_shape, out_specs = _fine_out(BH, Lc, K4, d, Lt, emit_attn)
    kern = functools.partial(_fine_gather_kernel, temp=temp)
    out = pl.pallas_call(
        kern,
        out_shape=out_shape,
        grid=(BH, Lc // Lt),                        # BH outer so k/v stay resident per head
        in_specs=[pl.BlockSpec((1, Lt, K4), lambda i, j: (i, j, 0)),
                  pl.BlockSpec((1, Lt, 4, d), lambda i, j: (i, j, 0, 0)),
                  pl.BlockSpec((1, S, d), lambda i, j: (i, 0, 0)),
                  pl.BlockSpec((1, S, d), lambda i, j: (i, 0, 0))],
        out_specs=out_specs,
        compiler_params=pltpu.CompilerParams(
            dimension_semantics=("parallel", "parallel"),
            vmem_limit_bytes=_VMEM_LIMIT_BYTES),
    )(idx, qh, kh, vh)
    return (out[0], out[1]) if emit_attn else (None, out[0])


def _fine_attention_pregathered(qh, kg, vg, temp, *, emit_attn):
    BH, Lc, _, d = qh.shape
    K4 = kg.shape[2]
    Lt = _pick_lt(Lc, _fine_row_bytes(d, K4, emit_attn, pregathered=True), 0)
    out_shape, out_specs = _fine_out(BH, Lc, K4, d, Lt, emit_attn)
    kern = functools.partial(_fine_pregathered_kernel, temp=temp)
    # TODO(synk): if DMA is still exposed here, add pipeline_mode=pl.Buffered(3)
    # on the kg/vg BlockSpecs (kept plain so this fallback path always lowers).
    out = pl.pallas_call(
        kern,
        out_shape=out_shape,
        grid=(BH, Lc // Lt),
        in_specs=[pl.BlockSpec((1, Lt, 4, d), lambda i, j: (i, j, 0, 0)),
                  pl.BlockSpec((1, Lt, K4, d), lambda i, j: (i, j, 0, 0)),
                  pl.BlockSpec((1, Lt, K4, d), lambda i, j: (i, j, 0, 0))],
        out_specs=out_specs,
        compiler_params=pltpu.CompilerParams(
            dimension_semantics=("parallel", "parallel"),
            vmem_limit_bytes=_VMEM_LIMIT_BYTES),
    )(qh, kg, vg)
    return (out[0], out[1]) if emit_attn else (None, out[0])


def fine_attention(qh, kh, vh, idx, temp, *, emit_attn):
    """qh: [BH, Lc, 4, d] bf16; kh/vh: [BH, S, d] bf16; idx: [BH, Lc, K4] int32.

    Returns (A or None, message) with A: [BH, Lc, 4*K4] bf16 (t-major) and
    message: [BH, Lc, 4*d] f32 (t-major).
    """
    global _IN_KERNEL_GATHER_OK
    BH, Lc, _, d = qh.shape
    S = kh.shape[1]
    K4 = idx.shape[2]
    resident_kv = 2 * 2 * S * d * 2                  # double-buffered k + v slabs (bf16)
    if _IN_KERNEL_GATHER_OK and resident_kv <= _VMEM_BUDGET // 2:
        try:
            return _fine_attention_gather(qh, kh, vh, idx, temp, emit_attn=emit_attn)
        except Exception:
            _IN_KERNEL_GATHER_OK = False             # Mosaic can't lower the row gather
    # Fallback: gather the K4 key/value rows once per level in XLA and stream
    # pre-gathered [Lt, K4, d] blocks through the kernel.
    idx_flat = idx.reshape(BH, Lc * K4)
    kg = jnp.take_along_axis(kh, idx_flat[:, :, None], axis=1).reshape(BH, Lc, K4, d)
    vg = jnp.take_along_axis(vh, idx_flat[:, :, None], axis=1).reshape(BH, Lc, K4, d)
    return _fine_attention_pregathered(qh, kg, vg, temp, emit_attn=emit_attn)


# ----------------------------------------------------------------------------
# QTAttB forward (glue in plain JAX, hot paths in the kernels above)
# ----------------------------------------------------------------------------
def qt_att_b_forward(queries, keys, values, weight_param, *, nhead, topks):
    """Quadtree attention forward (lepe=False, rel_pos=None, no dropout).

    queries/keys/values: lists of NCHW arrays, finest level first, coarsest last
    (the module iterates reversed(...), coarsest level first).
    Returns [B, H_fine*W_fine, nhead, head_dim] (float32).
    """
    B, C, _, _ = queries[0].shape
    d = C // nhead
    temp = 1.0 / (d ** 0.5)
    scale = len(queries)

    def to_heads(x):       # [B, C, H, W] -> [B*nhead, H*W, d]   (XLA glue)
        b, c, h, w = x.shape
        x = x.transpose(0, 2, 3, 1).reshape(b, h * w, nhead, d)
        return x.transpose(0, 2, 1, 3).reshape(b * nhead, h * w, d)
    # TODO(synk): the NCHW->heads / pixel-unshuffle reshapes and the final
    # weighted pyramid recombination stay in XLA glue; they are pure layout
    # plumbing, not expressible as rectangular BlockSpec index_maps on NCHW.

    messages = []
    shapes = []
    topk = topks[0]
    topk_r = topk_c = None

    for i, (q, k, v) in enumerate(zip(reversed(queries), reversed(keys),
                                      reversed(values))):
        _, _, h, w = k.shape
        shapes.append((h, w))
        is_last = i == scale - 1
        kh = to_heads(k).astype(jnp.bfloat16)             # [BH, S, d]
        vh = to_heads(v).astype(jnp.bfloat16)

        if i == 0:
            qh = to_heads(q).astype(jnp.bfloat16)
            A, msg = coarse_attention(qh, kh, vh, temp)
            messages.append(msg.reshape(B, nhead, h * w, d))
            if not is_last:
                A = A.reshape(B, nhead, h * w, h * w)
                # TODO(synk): torch.topk has no Mosaic lowering; jax.lax.top_k in glue.
                _, topk_idx = jax.lax.top_k(A, topk)      # [B, nh, L, topk]
        else:
            topk_prev = topk
            topk = topks[i]
            hp, wp = h // 2, w // 2
            Lp = hp * wp
            BH = B * nhead
            # 2x2 children of the previous level's top-k positions.
            r2, c2 = topk_r * 2, topk_c * 2
            idx_list = []
            for x_ in (0, 1):
                for y_ in (0, 1):
                    idx_list.append((r2 + x_) * w + (c2 + y_))
            idx = jnp.stack(idx_list, axis=-1)            # [B, nh, Lp, topk_prev, 4]
            K4 = topk_prev * 4
            idx = idx.reshape(B, nhead, Lp, K4).astype(jnp.int32)

            # queries of the 2x2 sub-positions of each cell: [BH, Lp, 4, d]
            qh = q.reshape(B, nhead, d, hp, 2, wp, 2)
            qh = qh.transpose(0, 1, 3, 5, 4, 6, 2)        # B, nh, hp, wp, t1, t2, d
            qh = qh.reshape(BH, Lp, 4, d).astype(jnp.bfloat16)

            A, msg = fine_attention(qh, kh, vh, idx.reshape(BH, Lp, K4), temp,
                                    emit_attn=not is_last)
            messages.append(msg.reshape(B, nhead, Lp, 4, d))

            if not is_last:
                A = A.reshape(B, nhead, Lp, 4, K4)        # t-major packing of last dim
                _, topk_local = jax.lax.top_k(A, topk)    # [B, nh, Lp, 4, topk]
                idx_b = jnp.broadcast_to(idx[:, :, :, None, :], (B, nhead, Lp, 4, K4))
                topk_idx = jnp.take_along_axis(idx_b, topk_local, axis=-1)
                # back to fine-level raster order: [B, nh, h*w, topk]
                topk_idx = topk_idx.reshape(B, nhead, hp, wp, 2, 2, topk)
                topk_idx = (topk_idx.transpose(0, 1, 2, 4, 3, 5, 6)
                            .reshape(B, nhead, h * w, topk))

        if not is_last:
            topk_r = topk_idx // w
            topk_c = topk_idx % w

    # weighted pyramid combination (elementwise XLA glue)
    wts = jax.nn.softmax(weight_param)
    final = messages[0] * wts[0]                           # [B, nh, L0, d]
    for i in range(1, scale):
        h_i, w_i = shapes[i]
        hp, wp = h_i // 2, w_i // 2
        final = final[:, :, :, None, :] + messages[i] * wts[i]     # [B, nh, Lp, 4, d]
        final = final.reshape(B, nhead, hp, wp, 2, 2, d)
        final = final.transpose(0, 1, 2, 4, 3, 5, 6).reshape(B, nhead, h_i * w_i, d)
    return final.transpose(0, 2, 1, 3)                     # [B, H*W, nhead, d]


# ----------------------------------------------------------------------------
if __name__ == "__main__":
    B = 2
    nhead = 2
    head_dim = 4
    C = nhead * head_dim
    scale = 3
    topks = [8, 8, 8]
    H0 = 16            # finest spatial size; pyramid: 16 -> 8 -> 4

    key = jax.random.PRNGKey(0)
    ks = jax.random.split(key, 3 * scale + 1)

    queries, keys_, values = [], [], []
    h = H0
    for lvl in range(scale):
        queries.append(jax.random.normal(ks[3 * lvl + 0], (B, C, h, h), jnp.float32))
        keys_.append(jax.random.normal(ks[3 * lvl + 1], (B, C, h, h), jnp.float32))
        values.append(jax.random.normal(ks[3 * lvl + 2], (B, C, h, h), jnp.float32))
        h //= 2
    # nn.Parameter(torch.randn(scale)) -> deterministic random init in-script
    weight_param = jax.random.normal(ks[-1], (scale,), jnp.float32)

    out = qt_att_b_forward(queries, keys_, values, weight_param,
                           nhead=nhead, topks=topks)
    out = jax.block_until_ready(out)
    assert out.shape == (B, H0 * H0, nhead, head_dim), out.shape
    assert bool(jnp.all(jnp.isfinite(out)))
    print("KERNEL_OK")
</pallas_src>

<mosaic_0001>
module attributes {stable_mosaic.version = 11 : i64} {
  func.func @_coarse_attn_kernel(%arg0: i32, %arg1: memref<4x16x4xbf16, #tpu.memory_space<vmem>>, %arg2: memref<4x16x4xbf16, #tpu.memory_space<vmem>>, %arg3: memref<4x16x4xbf16, #tpu.memory_space<vmem>>, %arg4: memref<4x16x16xbf16, #tpu.memory_space<vmem>>, %arg5: memref<4x16x4xf32, #tpu.memory_space<vmem>>) attributes {dimension_semantics = [#tpu.dimension_semantics<arbitrary>], iteration_bounds = array<i64: 1>, scalar_prefetch = 0 : i64, scratch_operands = 0 : i64, tpu.core_type = #tpu.core_type<tc>, window_params = [{pipeline_mode = #tpu.pipeline_mode<synchronous>, transform_indices = @transform_0, window_bounds = array<i64: 4, 16, 4>}, {pipeline_mode = #tpu.pipeline_mode<synchronous>, transform_indices = @transform_1, window_bounds = array<i64: 4, 16, 4>}, {pipeline_mode = #tpu.pipeline_mode<synchronous>, transform_indices = @transform_2, window_bounds = array<i64: 4, 16, 4>}, {pipeline_mode = #tpu.pipeline_mode<synchronous>, transform_indices = @transform_3, window_bounds = array<i64: 4, 16, 16>}, {pipeline_mode = #tpu.pipeline_mode<synchronous>, transform_indices = @transform_4, window_bounds = array<i64: 4, 16, 4>}]} {
    %c0 = arith.constant 0 : index
    %c0_0 = arith.constant 0 : index
    %c0_1 = arith.constant 0 : index
    %0 = vector.load %arg1[%c0, %c0_0, %c0_1] : memref<4x16x4xbf16, #tpu.memory_space<vmem>>, vector<4x16x4xbf16>
    %c0_2 = arith.constant 0 : index
    %c0_3 = arith.constant 0 : index
    %c0_4 = arith.constant 0 : index
    %1 = vector.load %arg2[%c0_2, %c0_3, %c0_4] : memref<4x16x4xbf16, #tpu.memory_space<vmem>>, vector<4x16x4xbf16>
    %c0_5 = arith.constant 0 : index
    %c0_6 = arith.constant 0 : index
    %c0_7 = arith.constant 0 : index
    %2 = vector.load %arg3[%c0_5, %c0_6, %c0_7] : memref<4x16x4xbf16, #tpu.memory_space<vmem>>, vector<4x16x4xbf16>
    "tpu.trace_start"() <{level = 10 : i32, message = "gld,gsd->gls"}> : () -> ()
    %cst = arith.constant dense<0.000000e+00> : vector<4x16x16xf32>
    %3 = tpu.matmul %0, %1, %cst {dimension_numbers = #tpu.dot_dimension_numbers<[2], [2], [1], [1], [0, 0, 0, 1, 1, 1], [0], [0]>} : vector<4x16x4xbf16>, vector<4x16x4xbf16>, vector<4x16x16xf32> -> vector<4x16x16xf32>
    "tpu.trace_stop"() : () -> ()
    %cst_8 = arith.constant 5.000000e-01 : f32
    %4 = vector.broadcast %cst_8 : f32 to vector<4x16x16xf32>
    %5 = arith.mulf %3, %4 : vector<4x16x16xf32>
    %cst_9 = arith.constant dense<0xFF800000> : vector<4x16xf32>
    %6 = vector.multi_reduction <maximumf>, %5, %cst_9 [2] : vector<4x16x16xf32> to vector<4x16xf32>
    %7 = vector.shape_cast %6 : vector<4x16xf32> to vector<4x16x1xf32>
    %8 = vector.broadcast %7 : vector<4x16x1xf32> to vector<4x16x16xf32>
    %9 = arith.subf %5, %8 : vector<4x16x16xf32>
    %10 = math.exp %9 : vector<4x16x16xf32>
    %cst_10 = arith.constant dense<0.000000e+00> : vector<4x16xf32>
    %11 = vector.multi_reduction <add>, %10, %cst_10 [2] : vector<4x16x16xf32> to vector<4x16xf32>
    %12 = vector.shape_cast %11 : vector<4x16xf32> to vector<4x16x1xf32>
    %13 = vector.broadcast %12 : vector<4x16x1xf32> to vector<4x16x16xf32>
    %14 = arith.divf %10, %13 : vector<4x16x16xf32>
    %15 = arith.truncf %14 : vector<4x16x16xf32> to vector<4x16x16xbf16>
    %c0_11 = arith.constant 0 : index
    %c0_12 = arith.constant 0 : index
    %c0_13 = arith.constant 0 : index
    %16 = vector.load %arg4[%c0_11, %c0_12, %c0_13] : memref<4x16x16xbf16, #tpu.memory_space<vmem>>, vector<4x16x16xbf16>
    tpu.vector_store %arg4[%c0_11, %c0_12, %c0_13], %15 {strides = array<i32>} : memref<4x16x16xbf16, #tpu.memory_space<vmem>>, vector<4x16x16xbf16>,
    %17 = arith.truncf %14 : vector<4x16x16xf32> to vector<4x16x16xbf16>
    "tpu.trace_start"() <{level = 10 : i32, message = "gls,gsd->gld"}> : () -> ()
    %cst_14 = arith.constant dense<0.000000e+00> : vector<4x16x4xf32>
    %18 = tpu.matmul %17, %2, %cst_14 {dimension_numbers = #tpu.dot_dimension_numbers<[2], [1], [1], [2], [0, 0, 0, 1, 1, 2], [0], [0]>} : vector<4x16x16xbf16>, vector<4x16x4xbf16>, vector<4x16x4xf32> -> vector<4x16x4xf32>
    "tpu.trace_stop"() : () -> ()
    %c0_15 = arith.constant 0 : index
    %c0_16 = arith.constant 0 : index
    %c0_17 = arith.constant 0 : index
    %19 = vector.load %arg5[%c0_15, %c0_16, %c0_17] : memref<4x16x4xf32, #tpu.memory_space<vmem>>, vector<4x16x4xf32>
    tpu.vector_store %arg5[%c0_15, %c0_16, %c0_17], %18 {strides = array<i32>} : memref<4x16x4xf32, #tpu.memory_space<vmem>>, vector<4x16x4xf32>,
    return
  }
  func.func @transform_0(%arg0: i32) -> (i32, i32, i32) {
    %c0_i32 = arith.constant 0 : i32
    %c0_i32_0 = arith.constant 0 : i32
    %c0_i32_1 = arith.constant 0 : i32
    %c0_i32_2 = arith.constant 0 : i32
    return %c0_i32, %c0_i32_0, %c0_i32_1 : i32, i32, i32
  }
  func.func @transform_1(%arg0: i32) -> (i32, i32, i32) {
    %c0_i32 = arith.constant 0 : i32
    %c0_i32_0 = arith.constant 0 : i32
    %c0_i32_1 = arith.constant 0 : i32
    %c0_i32_2 = arith.constant 0 : i32
    return %c0_i32, %c0_i32_0, %c0_i32_1 : i32, i32, i32
  }
  func.func @transform_2(%arg0: i32) -> (i32, i32, i32) {
    %c0_i32 = arith.constant 0 : i32
    %c0_i32_0 = arith.constant 0 : i32
    %c0_i32_1 = arith.constant 0 : i32
    %c0_i32_2 = arith.constant 0 : i32
    return %c0_i32, %c0_i32_0, %c0_i32_1 : i32, i32, i32
  }
  func.func @transform_3(%arg0: i32) -> (i32, i32, i32) {
    %c0_i32 = arith.constant 0 : i32
    %c0_i32_0 = arith.constant 0 : i32
    %c0_i32_1 = arith.constant 0 : i32
    %c0_i32_2 = arith.constant 0 : i32
    return %c0_i32, %c0_i32_0, %c0_i32_1 : i32, i32, i32
  }
  func.func @transform_4(%arg0: i32) -> (i32, i32, i32) {
    %c0_i32 = arith.constant 0 : i32
    %c0_i32_0 = arith.constant 0 : i32
    %c0_i32_1 = arith.constant 0 : i32
    %c0_i32_2 = arith.constant 0 : i32
    return %c0_i32, %c0_i32_0, %c0_i32_1 : i32, i32, i32
  }
}

</mosaic_0001>

<llo_original>
// kernel: tpu_custom_call.1
$region0: #{tpu_custom_call.1}
  #allocation0 [shape = 'u32[]', space=smem, size = 0x4, offset = 0x4, fixed_abs, tag = 'smem constant byte address 0x4 - core index']
  #allocation1 [shape = 'u32[72,128]{1,0:T(1,128)}', space=vmem, size = 0x9000, scoped, tag = 'internal scratch']
  %s0 = inlined_call_operand.vmem [shape: bf16[4,16,4], index: 0, kind: input, shape index: {}]
  %s1 = inlined_call_operand.vmem [shape: bf16[4,16,4], index: 1, kind: input, shape index: {}]
  %s2 = inlined_call_operand.vmem [shape: bf16[4,16,4], index: 2, kind: input, shape index: {}]
  %s3 = inlined_call_operand.hbm [shape: bf16[4,16,16], index: 3, kind: output, shape index: {0}]
  %s4 = inlined_call_operand.vmem [shape: f32[4,16,4], index: 4, kind: output, shape index: {1}]
  %5 = xla_tuple %s3, %s4
  %s6 = sld [smem:[#allocation0]]
  $region30: #{tpu_custom_call.1} parent=0
    _
  %s8 = ssub.s32 1, %s6
  %s9 = scalar_select 0, %s8, %s6
  $region1: #{tpu_custom_call.1} parent=0
    #allocation2 [shape = 'u8[16384]{0}', space=vmem, size = 0x4000, scoped, tag = 'output window, operand 0, single buffered']
    #allocation3 [shape = 's32[1]{0}', space=sflag, size = 0x4, scoped, tag = 'scoped memory for tpu_custom_call.1']
    %10 = vsyncpa [#allocation3], 0
    // Predicated region
    $region2: #{tpu_custom_call.1} parent=1 // pred_check
      _
    $region3: #{tpu_custom_call.1} parent=1 // pred_check_branch
      %12 = sbr.rel (0) target = $region5
    $region4: #{tpu_custom_call.1} parent=1 // pred_region
      _
    $region5: #{tpu_custom_call.1} parent=1 // pred_fallthru
      _
    // Predicated region
    $region6: #{tpu_custom_call.1} parent=1 // pred_check
      _
    $region7: #{tpu_custom_call.1} parent=1 // pred_check_branch
      %14 = sbr.rel (0) target = $region9
    $region8: #{tpu_custom_call.1} parent=1 // pred_region
      _
    $region9: #{tpu_custom_call.1} parent=1 // pred_fallthru
      _
    // Predicated region
    $region10: #{tpu_custom_call.1} parent=1 // pred_check
      _
    $region11: #{tpu_custom_call.1} parent=1 // pred_check_branch
      %16 = sbr.rel (0) target = $region13
    $region12: #{tpu_custom_call.1} parent=1 // pred_region
      _
    $region13: #{tpu_custom_call.1} parent=1 // pred_fallthru
      _
    %v18 = vld [vmem:[%s0] sm:$0xf]
    %v19 = vld [vmem:[%s0 + $0x4] sm:$0xf]
    %v20 = vld [vmem:[%s0 + $0x8] sm:$0xf]
    %v21 = vld [vmem:[%s0 + $0xc] sm:$0xf]
    %v22 = vld [vmem:[%s0 + $0x10] sm:$0xf]
    %v23 = vld [vmem:[%s0 + $0x14] sm:$0xf]
    %v24 = vld [vmem:[%s0 + $0x18] sm:$0xf]
    %v25 = vld [vmem:[%s0 + $0x1c] sm:$0xf]
    %v26 = vld [vmem:[%s1] sm:$0xf]
    %v27 = vld [vmem:[%s1 + $0x4] sm:$0xf]
    %v28 = vld [vmem:[%s1 + $0x8] sm:$0xf]
    %v29 = vld [vmem:[%s1 + $0xc] sm:$0xf]
    %v30 = vld [vmem:[%s1 + $0x10] sm:$0xf]
    %v31 = vld [vmem:[%s1 + $0x14] sm:$0xf]
    %v32 = vld [vmem:[%s1 + $0x18] sm:$0xf]
    %v33 = vld [vmem:[%s1 + $0x1c] sm:$0xf]
    %v34 = vld [vmem:[%s2] sm:$0xf]
    %v35 = vld [vmem:[%s2 + $0x4] sm:$0xf]
    %v36 = vld [vmem:[%s2 + $0x8] sm:$0xf]
    %v37 = vld [vmem:[%s2 + $0xc] sm:$0xf]
    %v38 = vld [vmem:[%s2 + $0x10] sm:$0xf]
    %v39 = vld [vmem:[%s2 + $0x14] sm:$0xf]
    %v40 = vld [vmem:[%s2 + $0x18] sm:$0xf]
    %v41 = vld [vmem:[%s2 + $0x1c] sm:$0xf]
    %v44 = vunpack.c.l.b16 %v18
    %v45 = vunpack.c.l.b16 %v19
    %v46 = vpack.c.b16 %v45, %v44
    %v49 = vunpack.c.l.b16 %v26
    %v50 = vunpack.c.l.b16 %v27
    %v51 = vpack.c.b16 %v50, %v49
    %vm52 = vcmask 31744
    %v54 = vsel %vm52, %v46, 0
    %v57 = vsel %vm52, %v51, 0
    %59 = vmatpush.bf16.xpose.msra.mxu0 0
    %60 = vmatpush.bf16.xpose.msra.mxu0 0
    %61 = vmatpush.bf16.xpose.msra.mxu0 0
    %62 = vmatpush.bf16.xpose.msra.mxu0 0
    %63 = vmatpush.bf16.xpose.msra.mxu0 0
    %64 = vmatpush.bf16.xpose.msra.mxu0 0
    %65 = vmatpush.bf16.xpose.msra.mxu0 0
    %66 = vmatpush.bf16.xpose.msra.mxu0 %v57
    %67 = vmatmul.bf16.gmra.mxu0 %v54
    %v68 = vpop.f32.mrf.mxu0
    %v69 = vadd.f32 0.0, %v68
    %v70 = vpop.f32.mrf.mxu0
    %v71 = vadd.f32 0.0, %v70
    %72 = vdwg.mxu0
    %v75 = vunpack.c.l.b16 %v20
    %v76 = vunpack.c.l.b16 %v21
    %v77 = vpack.c.b16 %v76, %v75
    %v80 = vunpack.c.l.b16 %v28
    %v81 = vunpack.c.l.b16 %v29
    %v82 = vpack.c.b16 %v81, %v80
    %v84 = vsel %vm52, %v77, 0
    %v87 = vsel %vm52, %v82, 0
    %89 = vmatpush.bf16.xpose.msra.mxu0 0
    %90 = vmatpush.bf16.xpose.msra.mxu0 0
    %91 = vmatpush.bf16.xpose.msra.mxu0 0
    %92 = vmatpush.bf16.xpose.msra.mxu0 0
    %93 = vmatpush.bf16.xpose.msra.mxu0 0
    %94 = vmatpush.bf16.xpose.msra.mxu0 0
    %95 = vmatpush.bf16.xpose.msra.mxu0 0
    %96 = vmatpush.bf16.xpose.msra.mxu0 %v87
    %97 = vmatmul.bf16.gmra.mxu0 %v84
    %v98 = vpop.f32.mrf.mxu0
    %v99 = vadd.f32 0.0, %v98
    %v100 = vpop.f32.mrf.mxu0
    %v101 = vadd.f32 0.0, %v100
    %102 = vdwg.mxu0
    %v105 = vunpack.c.l.b16 %v22
    %v106 = vunpack.c.l.b16 %v23
    %v107 = vpack.c.b16 %v106, %v105
    %v110 = vunpack.c.l.b16 %v30
    %v111 = vunpack.c.l.b16 %v31
    %v112 = vpack.c.b16 %v111, %v110
    %v114 = vsel %vm52, %v107, 0
    %v117 = vsel %vm52, %v112, 0
    %119 = vmatpush.bf16.xpose.msra.mxu0 0
    %120 = vmatpush.bf16.xpose.msra.mxu0 0
    %121 = vmatpush.bf16.xpose.msra.mxu0 0
    %122 = vmatpush.bf16.xpose.msra.mxu0 0
    %123 = vmatpush.bf16.xpose.msra.mxu0 0
    %124 = vmatpush.bf16.xpose.msra.mxu0 0
    %125 = vmatpush.bf16.xpose.msra.mxu0 0
    %126 = vmatpush.bf16.xpose.msra.mxu0 %v117
    %127 = vmatmul.bf16.gmra.mxu0 %v114
    %v128 = vpop.f32.mrf.mxu0
    %v129 = vadd.f32 0.0, %v128
    %v130 = vpop.f32.mrf.mxu0
    %v131 = vadd.f32 0.0, %v130
    %132 = vdwg.mxu0
    %v135 = vunpack.c.l.b16 %v24
    %v136 = vunpack.c.l.b16 %v25
    %v137 = vpack.c.b16 %v136, %v135
    %v140 = vunpack.c.l.b16 %v32
    %v141 = vunpack.c.l.b16 %v33
    %v142 = vpack.c.b16 %v141, %v140
    %v144 = vsel %vm52, %v137, 0
    %v147 = vsel %vm52, %v142, 0
    %149 = vmatpush.bf16.xpose.msra.mxu0 0
    %150 = vmatpush.bf16.xpose.msra.mxu0 0
    %151 = vmatpush.bf16.xpose.msra.mxu0 0
    %152 = vmatpush.bf16.xpose.msra.mxu0 0
    %153 = vmatpush.bf16.xpose.msra.mxu0 0
    %154 = vmatpush.bf16.xpose.msra.mxu0 0
    %155 = vmatpush.bf16.xpose.msra.mxu0 0
    %156 = vmatpush.bf16.xpose.msra.mxu0 %v147
    %157 = vmatmul.bf16.gmra.mxu0 %v144
    %v158 = vpop.f32.mrf.mxu0
    %v159 = vadd.f32 0.0, %v158
    %v160 = vpop.f32.mrf.mxu0
    %v161 = vadd.f32 0.0, %v160
    %162 = vdwg.mxu0
    %v163 = vmul.f32 %v69, 0.5
    %v164 = vmul.f32 %v71, 0.5
    %v165 = vmul.f32 %v99, 0.5
    %v166 = vmul.f32 %v101, 0.5
    %v167 = vmul.f32 %v129, 0.5
    %v168 = vmul.f32 %v131, 0.5
    %v169 = vmul.f32 %v159, 0.5
    %v170 = vmul.f32 %v161, 0.5
    %vm171 = vcmask 130048
    %v172 = vsel %vm171, %v163, -inf
    %173 = vmax.xlane.f32.xlu0 %v172
    %v174 = vpop.xlane.xlu0 %173
    %v175 = vsel %vm171, %v164, -inf
    %176 = vmax.xlane.f32.xlu0 %v175
    %v177 = vpop.xlane.xlu0 %176
    %v178 = vsel %vm171, %v165, -inf
    %179 = vmax.xlane.f32.xlu0 %v178
    %v180 = vpop.xlane.xlu0 %179
    %v181 = vsel %vm171, %v166, -inf
    %182 = vmax.xlane.f32.xlu0 %v181
    %v183 = vpop.xlane.xlu0 %182
    %v184 = vsel %vm171, %v167, -inf
    %185 = vmax.xlane.f32.xlu0 %v184
    %v186 = vpop.xlane.xlu0 %185
    %v187 = vsel %vm171, %v168, -inf
    %188 = vmax.xlane.f32.xlu0 %v187
    %v189 = vpop.xlane.xlu0 %188
    %v190 = vsel %vm171, %v169, -inf
    %191 = vmax.xlane.f32.xlu0 %v190
    %v192 = vpop.xlane.xlu0 %191
    %v193 = vsel %vm171, %v170, -inf
    %194 = vmax.xlane.f32.xlu0 %v193
    %v195 = vpop.xlane.xlu0 %194
    %v196 = vsub.f32 %v163, %v174
    %v197 = vsub.f32 %v164, %v177
    %v198 = vsub.f32 %v165, %v180
    %v199 = vsub.f32 %v166, %v183
    %v200 = vsub.f32 %v167, %v186
    %v201 = vsub.f32 %v168, %v189
    %v202 = vsub.f32 %v169, %v192
    %v203 = vsub.f32 %v170, %v195
    %v204 = vmul.f32 %v196, 1.442695
    %v205 = vpow.pop %v204
    %v206 = vmul.f32 %v197, 1.442695
    %v207 = vpow.pop %v206
    %v208 = vmul.f32 %v198, 1.442695
    %v209 = vpow.pop %v208
    %v210 = vmul.f32 %v199, 1.442695
    %v211 = vpow.pop %v210
    %v212 = vmul.f32 %v200, 1.442695
    %v213 = vpow.pop %v212
    %v214 = vmul.f32 %v201, 1.442695
    %v215 = vpow.pop %v214
    %v216 = vmul.f32 %v202, 1.442695
    %v217 = vpow.pop %v216
    %v218 = vmul.f32 %v203, 1.442695
    %v219 = vpow.pop %v218
    %v220 = vsel %vm171, %v205, 0.0
    %221 = vadd.xlane.f32.xlu0 %v220
    %v222 = vpop.xlane.xlu0 %221
    %v223 = vsel %vm171, %v207, 0.0
    %224 = vadd.xlane.f32.xlu0 %v223
    %v225 = vpop.xlane.xlu0 %224
    %v226 = vsel %vm171, %v209, 0.0
    %227 = vadd.xlane.f32.xlu0 %v226
    %v228 = vpop.xlane.xlu0 %227
    %v229 = vsel %vm171, %v211, 0.0
    %230 = vadd.xlane.f32.xlu0 %v229
    %v231 = vpop.xlane.xlu0 %230
    %v232 = vsel %vm171, %v213, 0.0
    %233 = vadd.xlane.f32.xlu0 %v232
    %v234 = vpop.xlane.xlu0 %233
    %v235 = vsel %vm171, %v215, 0.0
    %236 = vadd.xlane.f32.xlu0 %v235
    %v237 = vpop.xlane.xlu0 %236
    %v238 = vsel %vm171, %v217, 0.0
    %239 = vadd.xlane.f32.xlu0 %v238
    %v240 = vpop.xlane.xlu0 %239
    %v241 = vsel %vm171, %v219, 0.0
    %242 = vadd.xlane.f32.xlu0 %v241
    %v243 = vpop.xlane.xlu0 %242
    %v244 = vrcp.pop %v222
    %v245 = vmul.f32 %v222, %v244
    %v246 = vsub.f32 1.0, %v245
    %v247 = vmul.f32 %v244, %v246
    %v248 = vadd.f32 %v244, %v247
    %vm249 = vweird.f32 %v222
    %vm250 = vweird.f32 %v244
    %vm251 = vmor %vm249, %vm250
    %v252 = vsel %vm251, %v244, %v248
    %v253 = vand.u32 2147483647, %v222
    %vm254 = vcmp.eq.f32.partialorder %v253, 8.507059e+37
    %v255 = vand.u32 %v222, 2147483648
    %v256 = vor.u32 1.1754944e-38, %v255
    %v257 = vsel %vm254, %v256, %v252
    %v258 = vmul.f32 %v205, %v257
    %v259 = vrcp.pop %v225
    %v260 = vmul.f32 %v225, %v259
    %v261 = vsub.f32 1.0, %v260
    %v262 = vmul.f32 %v259, %v261
    %v263 = vadd.f32 %v259, %v262
    %vm264 = vweird.f32 %v225
    %vm265 = vweird.f32 %v259
    %vm266 = vmor %vm264, %vm265
    %v267 = vsel %vm266, %v259, %v263
    %v268 = vand.u32 2147483647, %v225
    %vm269 = vcmp.eq.f32.partialorder %v268, 8.507059e+37
    %v270 = vand.u32 %v225, 2147483648
    %v271 = vor.u32 1.1754944e-38, %v270
    %v272 = vsel %vm269, %v271, %v267
    %v273 = vmul.f32 %v207, %v272
    %v274 = vrcp.pop %v228
    %v275 = vmul.f32 %v228, %v274
    %v276 = vsub.f32 1.0, %v275
    %v277 = vmul.f32 %v274, %v276
    %v278 = vadd.f32 %v274, %v277
    %vm279 = vweird.f32 %v228
    %vm280 = vweird.f32 %v274
    %vm281 = vmor %vm279, %vm280
    %v282 = vsel %vm281, %v274, %v278
    %v283 = vand.u32 2147483647, %v228
    %vm284 = vcmp.eq.f32.partialorder %v283, 8.507059e+37
    %v285 = vand.u32 %v228, 2147483648
    %v286 = vor.u32 1.1754944e-38, %v285
    %v287 = vsel %vm284, %v286, %v282
    %v288 = vmul.f32 %v209, %v287
    %v289 = vrcp.pop %v231
    %v290 = vmul.f32 %v231, %v289
    %v291 = vsub.f32 1.0, %v290
    %v292 = vmul.f32 %v289, %v291
    %v293 = vadd.f32 %v289, %v292
    %vm294 = vweird.f32 %v231
    %vm295 = vweird.f32 %v289
    %vm296 = vmor %vm294, %vm295
    %v297 = vsel %vm296, %v289, %v293
    %v298 = vand.u32 2147483647, %v231
    %vm299 = vcmp.eq.f32.partialorder %v298, 8.507059e+37
    %v300 = vand.u32 %v231, 2147483648
    %v301 = vor.u32 1.1754944e-38, %v300
    %v302 = vsel %vm299, %v301, %v297
    %v303 = vmul.f32 %v211, %v302
    %v304 = vrcp.pop %v234
    %v305 = vmul.f32 %v234, %v304
    %v306 = vsub.f32 1.0, %v305
    %v307 = vmul.f32 %v304, %v306
    %v308 = vadd.f32 %v304, %v307
    %vm309 = vweird.f32 %v234
    %vm310 = vweird.f32 %v304
    %vm311 = vmor %vm309, %vm310
    %v312 = vsel %vm311, %v304, %v308
    %v313 = vand.u32 2147483647, %v234
    %vm314 = vcmp.eq.f32.partialorder %v313, 8.507059e+37
    %v315 = vand.u32 %v234, 2147483648
    %v316 = vor.u32 1.1754944e-38, %v315
    %v317 = vsel %vm314, %v316, %v312
    %v318 = vmul.f32 %v213, %v317
    %v319 = vrcp.pop %v237
    %v320 = vmul.f32 %v237, %v319
    %v321 = vsub.f32 1.0, %v320
    %v322 = vmul.f32 %v319, %v321
    %v323 = vadd.f32 %v319, %v322
    %vm324 = vweird.f32 %v237
    %vm325 = vweird.f32 %v319
    %vm326 = vmor %vm324, %vm325
    %v327 = vsel %vm326, %v319, %v323
    %v328 = vand.u32 2147483647, %v237
    %vm329 = vcmp.eq.f32.partialorder %v328, 8.507059e+37
    %v330 = vand.u32 %v237, 2147483648
    %v331 = vor.u32 1.1754944e-38, %v330
    %v332 = vsel %vm329, %v331, %v327
    %v333 = vmul.f32 %v215, %v332
    %v334 = vrcp.pop %v240
    %v335 = vmul.f32 %v240, %v334
    %v336 = vsub.f32 1.0, %v335
    %v337 = vmul.f32 %v334, %v336
    %v338 = vadd.f32 %v334, %v337
    %vm339 = vweird.f32 %v240
    %vm340 = vweird.f32 %v334
    %vm341 = vmor %vm339, %vm340
    %v342 = vsel %vm341, %v334, %v338
    %v343 = vand.u32 2147483647, %v240
    %vm344 = vcmp.eq.f32.partialorder %v343, 8.507059e+37
    %v345 = vand.u32 %v240, 2147483648
    %v346 = vor.u32 1.1754944e-38, %v345
    %v347 = vsel %vm344, %v346, %v342
    %v348 = vmul.f32 %v217, %v347
    %v349 = vrcp.pop %v243
    %v350 = vmul.f32 %v243, %v349
    %v351 = vsub.f32 1.0, %v350
    %v352 = vmul.f32 %v349, %v351
    %v353 = vadd.f32 %v349, %v352
    %vm354 = vweird.f32 %v243
    %vm355 = vweird.f32 %v349
    %vm356 = vmor %vm354, %vm355
    %v357 = vsel %vm356, %v349, %v353
    %v358 = vand.u32 2147483647, %v243
    %vm359 = vcmp.eq.f32.partialorder %v358, 8.507059e+37
    %v360 = vand.u32 %v243, 2147483648
    %v361 = vor.u32 1.1754944e-38, %v360
    %v362 = vsel %vm359, %v361, %v357
    %v363 = vmul.f32 %v219, %v362
    %v364 = vpack.c.bf16 %v258, %v258
    %v365 = vpack.c.bf16 %v273, %v273
    %v366 = vpack.c.bf16 %v288, %v288
    %v367 = vpack.c.bf16 %v303, %v303
    %v368 = vpack.c.bf16 %v318, %v318
    %v369 = vpack.c.bf16 %v333, %v333
    %v370 = vpack.c.bf16 %v348, %v348
    %v371 = vpack.c.bf16 %v363, %v363
    %vm372 = vcmask 125952
    %373 = vst.msk [vmem:[#allocation2] sm:$0xf] %vm372, %v364
    %374 = vst.msk [vmem:[#allocation2 + $0x4] sm:$0xf] %vm372, %v365
    %375 = vst.msk [vmem:[#allocation2 + $0x8] sm:$0xf] %vm372, %v366
    %376 = vst.msk [vmem:[#allocation2 + $0xc] sm:$0xf] %vm372, %v367
    %377 = vst.msk [vmem:[#allocation2 + $0x10] sm:$0xf] %vm372, %v368
    %378 = vst.msk [vmem:[#allocation2 + $0x14] sm:$0xf] %vm372, %v369
    %379 = vst.msk [vmem:[#allocation2 + $0x18] sm:$0xf] %vm372, %v370
    %380 = vst.msk [vmem:[#allocation2 + $0x1c] sm:$0xf] %vm372, %v371
    %v383 = vunpack.c.l.b16 %v364
    %v384 = vunpack.c.l.b16 %v365
    %v385 = vpack.c.b16 %v384, %v383
    %v388 = vunpack.c.l.b16 %v34
    %v389 = vunpack.c.l.b16 %v35
    %v390 = vpack.c.b16 %v389, %v388
    %v393 = vsel %vm171, %v385, 0
    %395 = vmatpush.bf16.msra.mxu0 0
    %396 = vmatpush.bf16.msra.mxu0 0
    %397 = vmatpush.bf16.msra.mxu0 0
    %398 = vmatpush.bf16.msra.mxu0 0
    %399 = vmatpush.bf16.msra.mxu0 0
    %400 = vmatpush.bf16.msra.mxu0 0
    %401 = vmatpush.bf16.msra.mxu0 0
    %402 = vmatpush.bf16.msra.mxu0 %v390
    %403 = vmatmul.bf16.gmra.mxu0 %v393
    %v404 = vpop.f32.mrf.mxu0
    %v405 = vadd.f32 0.0, %v404
    %v406 = vpop.f32.mrf.mxu0
    %v407 = vadd.f32 0.0, %v406
    %408 = vdwg.mxu0
    %v411 = vunpack.c.l.b16 %v366
    %v412 = vunpack.c.l.b16 %v367
    %v413 = vpack.c.b16 %v412, %v411
    %v416 = vunpack.c.l.b16 %v36
    %v417 = vunpack.c.l.b16 %v37
    %v418 = vpack.c.b16 %v417, %v416
    %v421 = vsel %vm171, %v413, 0
    %423 = vmatpush.bf16.msra.mxu0 0
    %424 = vmatpush.bf16.msra.mxu0 0
    %425 = vmatpush.bf16.msra.mxu0 0
    %426 = vmatpush.bf16.msra.mxu0 0
    %427 = vmatpush.bf16.msra.mxu0 0
    %428 = vmatpush.bf16.msra.mxu0 0
    %429 = vmatpush.bf16.msra.mxu0 0
    %430 = vmatpush.bf16.msra.mxu0 %v418
    %431 = vmatmul.bf16.gmra.mxu0 %v421
    %v432 = vpop.f32.mrf.mxu0
    %v433 = vadd.f32 0.0, %v432
    %v434 = vpop.f32.mrf.mxu0
    %v435 = vadd.f32 0.0, %v434
    %436 = vdwg.mxu0
    %v439 = vunpack.c.l.b16 %v368
    %v440 = vunpack.c.l.b16 %v369
    %v441 = vpack.c.b16 %v440, %v439
    %v444 = vunpack.c.l.b16 %v38
    %v445 = vunpack.c.l.b16 %v39
    %v446 = vpack.c.b16 %v445, %v444
    %v449 = vsel %vm171, %v441, 0
    %451 = vmatpush.bf16.msra.mxu0 0
    %452 = vmatpush.bf16.msra.mxu0 0
    %453 = vmatpush.bf16.msra.mxu0 0
    %454 = vmatpush.bf16.msra.mxu0 0
    %455 = vmatpush.bf16.msra.mxu0 0
    %456 = vmatpush.bf16.msra.mxu0 0
    %457 = vmatpush.bf16.msra.mxu0 0
    %458 = vmatpush.bf16.msra.mxu0 %v446
    %459 = vmatmul.bf16.gmra.mxu0 %v449
    %v460 = vpop.f32.mrf.mxu0
    %v461 = vadd.f32 0.0, %v460
    %v462 = vpop.f32.mrf.mxu0
    %v463 = vadd.f32 0.0, %v462
    %464 = vdwg.mxu0
    %v467 = vunpack.c.l.b16 %v370
    %v468 = vunpack.c.l.b16 %v371
    %v469 = vpack.c.b16 %v468, %v467
    %v472 = vunpack.c.l.b16 %v40
    %v473 = vunpack.c.l.b16 %v41
    %v474 = vpack.c.b16 %v473, %v472
    %v477 = vsel %vm171, %v469, 0
    %479 = vmatpush.bf16.msra.mxu0 0
    %480 = vmatpush.bf16.msra.mxu0 0
    %481 = vmatpush.bf16.msra.mxu0 0
    %482 = vmatpush.bf16.msra.mxu0 0
    %483 = vmatpush.bf16.msra.mxu0 0
    %484 = vmatpush.bf16.msra.mxu0 0
    %485 = vmatpush.bf16.msra.mxu0 0
    %486 = vmatpush.bf16.msra.mxu0 %v474
    %487 = vmatmul.bf16.gmra.mxu0 %v477
    %v488 = vpop.f32.mrf.mxu0
    %v489 = vadd.f32 0.0, %v488
    %v490 = vpop.f32.mrf.mxu0
    %v491 = vadd.f32 0.0, %v490
    %492 = vdwg.mxu0
    %493 = vst.msk [vmem:[%s4] sm:$0xff] %vm52, %v405
    %494 = vst.msk [vmem:[%s4 + $0x8] sm:$0xff] %vm52, %v407
    %495 = vst.msk [vmem:[%s4 + $0x10] sm:$0xff] %vm52, %v433
    %496 = vst.msk [vmem:[%s4 + $0x18] sm:$0xff] %vm52, %v435
    %497 = vst.msk [vmem:[%s4 + $0x20] sm:$0xff] %vm52, %v461
    %498 = vst.msk [vmem:[%s4 + $0x28] sm:$0xff] %vm52, %v463
    %499 = vst.msk [vmem:[%s4 + $0x30] sm:$0xff] %vm52, %v489
    %500 = vst.msk [vmem:[%s4 + $0x38] sm:$0xff] %vm52, %v491
    // Predicated region
    $region14: #{tpu_custom_call.1} parent=1 // pred_check
      _
    $region15: #{tpu_custom_call.1} parent=1 // pred_check_branch
      %502 = sbr.rel (0) target = $region17
    $region16: #{tpu_custom_call.1} parent=1 // pred_region
      %504 = vsyncadd [#allocation3], 0
      %s505 = sshll.u32 [#allocation2], 4
      %s506 = int_to_ptr.vmem [resolvable:$true] %s505
      %s507 = sshll.u32 %s3, 4
      %s508 = int_to_ptr.hbm [resolvable:$true] %s507
      %513 = dma.vmem_to_hbm [thread:$0]  %s506, 512, %s508, [#allocation3], 64, 64, 4
    $region17: #{tpu_custom_call.1} parent=1 // pred_fallthru
      _
    // Predicated region
    $region18: #{tpu_custom_call.1} parent=1 // pred_check
      _
    $region19: #{tpu_custom_call.1} parent=1 // pred_check_branch
      %515 = sbr.rel (0) target = $region21
    $region20: #{tpu_custom_call.1} parent=1 // pred_region
      _
    $region21: #{tpu_custom_call.1} parent=1 // pred_fallthru
      _
    // Predicated region
    $region22: #{tpu_custom_call.1} parent=1 // pred_check
      _
    $region23: #{tpu_custom_call.1} parent=1 // pred_check_branch
      %517 = sbr.rel (0) target = $region25
    $region24: #{tpu_custom_call.1} parent=1 // pred_region
      %519 = dma.done [#allocation3], 512
    $region25: #{tpu_custom_call.1} parent=1 // pred_fallthru
      _
    // Predicated region
    $region26: #{tpu_custom_call.1} parent=1 // pred_check
      _
    $region27: #{tpu_custom_call.1} parent=1 // pred_check_branch
      %521 = sbr.rel (0) target = $region29
    $region28: #{tpu_custom_call.1} parent=1 // pred_region
      _
    $region29: #{tpu_custom_call.1} parent=1 // pred_fallthru
      _
    %522 = vsyncpa [#allocation3], 1

</llo_original>
